<compile_context>
chip_gen: v6e
topology: v6e:2x2x1
jax: 0.10.0
libtpu: 0.0.40
codegen_flags: <defaults>
</compile_context>

<pallas_src>
import math

import jax
import jax.numpy as jnp
from jax.experimental import pallas as pl
from jax.experimental.pallas import tpu as pltpu


def _vq_kernel(x_ref, e_ref, dist_ref, ind_ref, q_ref):
    # x_ref: (1, TN, D) bf16     e_ref: (1, C, D) bf16 (VMEM-resident per head)
    x = x_ref[0]                                    # (TN, D)
    e = e_ref[0]                                    # (C, D)
    C = e.shape[0]

    # dist = einsum('n d, c d -> n c'): contract the last dims directly on the MXU
    # (bf16 inputs, f32 accumulation); avoids materializing e.T in VMEM.
    dist = jax.lax.dot_general(
        x, e, dimension_numbers=(((1,), (1,)), ((), ())),
        preferred_element_type=jnp.float32)         # (TN, C) f32

    # argmax over codes; first-max tie-break (matches torch.argmax).
    max_val = jnp.max(dist, axis=-1, keepdims=True)               # (TN, 1)
    iota = jax.lax.broadcasted_iota(jnp.int32, dist.shape, 1)     # (TN, C)
    ind = jnp.min(jnp.where(dist == max_val, iota, C),
                  axis=-1, keepdims=True)                         # (TN, 1)

    # quantize = embed[ind] == one_hot(ind) @ embed.  0/1 is exact in bf16, so this
    # returns exactly the (bf16-rounded) codebook row, accumulated in f32.
    onehot = (iota == ind).astype(jnp.bfloat16)                   # (TN, C)
    q = jnp.dot(onehot, e, preferred_element_type=jnp.float32)    # (TN, D)

    dist_ref[0] = dist
    ind_ref[0] = ind
    q_ref[0] = q


def _pick_token_tile(N, C, D, *, max_tile_n=1024, vmem_budget=32 * 1024 * 1024):
    """Largest token tile whose double-buffered working set fits a conservative budget
    (valid on v7x's 64 MiB VMEM as well as v5e/v6e's 128 MiB)."""
    def footprint(tn):
        codebook = 2 * C * D * 2                       # bf16 codebook, 2 buffers
        per_tile = 2 * (tn * D * 2                     # x tile (bf16)
                        + tn * C * 4                   # dist tile (f32)
                        + tn * 4                       # ind tile (i32)
                        + tn * D * 4)                  # quantize tile (f32)
        return codebook + per_tile

    if N <= max_tile_n and footprint(N) <= vmem_budget:
        return N                                       # single tile per head
    tn = max_tile_n                                    # multiples of 128 from here on
    while tn > 128 and footprint(tn) > vmem_budget:
        tn //= 2
    return tn


def cosine_sim_codebook_forward(x, embed):
    """Forward pass of CosineSimCodebook (eval mode, no mask, no EMA update).

    x:     (b, n, d) float  (or (h, b, n, d))
    embed: (h, codebook_size, d), l2-normalized codebook.
    Returns (quantize, embed_ind, dist) with PyTorch-matching shapes:
      quantize  (b, n, d)                  [h squeezed if input had no h dim]
      embed_ind (b, n)   int32             [torch returns int64; int32 here]
      dist      (h, b, n, codebook_size)   [h kept, as in the PyTorch code]
    """
    x = x.astype(jnp.float32)
    needs_codebook_dim = x.ndim < 4
    if needs_codebook_dim:
        x = x[None]
    H, B, Nn, D = x.shape
    C = embed.shape[1]
    N = B * Nn
    flatten = x.reshape(H, N, D)                     # pack_one(x, 'h * d')

    TN = _pick_token_tile(N, C, D)
    N_pad = ((N + TN - 1) // TN) * TN
    if N_pad != N:
        flatten = jnp.pad(flatten, ((0, 0), (0, N_pad - N), (0, 0)))
    NT = N_pad // TN

    # bf16 operands (f32 accumulation inside the kernel): halves the x DMA stream and
    # the resident codebook footprint (matters most on v7x's 64 MiB VMEM).
    xb = flatten.astype(jnp.bfloat16)
    eb = embed.astype(jnp.bfloat16)

    dist, ind, quant = pl.pallas_call(
        _vq_kernel,
        grid=(H, NT),
        in_specs=[
            pl.BlockSpec((1, TN, D), lambda h, i: (h, i, 0)),
            # constant block index along the token-tile axis -> codebook stays resident
            pl.BlockSpec((1, C, D), lambda h, i: (h, 0, 0)),
        ],
        out_specs=[
            pl.BlockSpec((1, TN, C), lambda h, i: (h, i, 0)),
            pl.BlockSpec((1, TN, 1), lambda h, i: (h, i, 0)),
            pl.BlockSpec((1, TN, D), lambda h, i: (h, i, 0)),
        ],
        out_shape=[
            jax.ShapeDtypeStruct((H, N_pad, C), jnp.float32),
            jax.ShapeDtypeStruct((H, N_pad, 1), jnp.int32),
            jax.ShapeDtypeStruct((H, N_pad, D), jnp.float32),
        ],
        compiler_params=pltpu.CompilerParams(
            dimension_semantics=("parallel", "parallel"),
            vmem_limit_bytes=48 * 1024 * 1024,
        ),
    )(xb, eb)

    if N_pad != N:
        dist = dist[:, :N]
        ind = ind[:, :N]
        quant = quant[:, :N]
    dist = dist.reshape(H, B, Nn, C)                 # unpack_one(dist, ps, 'h * d')
    embed_ind = ind.reshape(H, B, Nn)                # unpack_one(embed_ind, ps, 'h *')
    quantize = quant.reshape(H, B, Nn, D)
    if needs_codebook_dim:
        quantize = quantize[0]
        embed_ind = embed_ind[0]
    return quantize, embed_ind, dist


def init_codebook(key, num_codebooks, codebook_size, dim):
    """embed = l2norm(kaiming_uniform(num_codebooks, codebook_size, dim))."""
    fan_in = codebook_size * dim                    # torch fan_in for a 3-D tensor
    bound = math.sqrt(6.0 / fan_in)                 # kaiming_uniform_ bound
    embed = jax.random.uniform(
        key, (num_codebooks, codebook_size, dim),
        minval=-bound, maxval=bound, dtype=jnp.float32)
    norm = jnp.clip(jnp.linalg.norm(embed, axis=-1, keepdims=True), 1e-12)
    return embed / norm                             # l2norm over last dim


# TODO(synk): training-path side effects (kmeans init, gumbel stochastic sampling,
# EMA cluster_size / embed_avg updates, dead-code expiry, distributed all_reduce)
# are stateful/random and are not part of this inference kernel.

if __name__ == "__main__":
    key = jax.random.PRNGKey(0)
    k_embed, k_x = jax.random.split(key)

    num_codebooks, codebook_size, dim = 1, 64, 32
    batch, seq = 2, 8

    embed = init_codebook(k_embed, num_codebooks, codebook_size, dim)
    x = jax.random.normal(k_x, (batch, seq, dim), dtype=jnp.float32)

    quantize, embed_ind, dist = jax.jit(cosine_sim_codebook_forward)(x, embed)
    jax.block_until_ready((quantize, embed_ind, dist))

    # Shape checks (PyTorch conventions).
    assert dist.shape == (num_codebooks, batch, seq, codebook_size)
    assert embed_ind.shape == (batch, seq)
    assert quantize.shape == (batch, seq, dim)

    # dist vs. an f32 reference; loose tolerance because the kernel matmul is
    # bf16-in / f32-accumulate (per the perf review).
    flatten = x.reshape(1, batch * seq, dim)
    dist_f32 = jnp.einsum('hnd,hcd->hnc', flatten, embed)
    assert jnp.allclose(dist.reshape(1, -1, codebook_size), dist_f32,
                        atol=5e-2, rtol=5e-2)

    # argmax is internally consistent with the returned dist (first-max tie-break).
    ind_from_dist = jnp.argmax(dist[0], axis=-1).astype(embed_ind.dtype)
    assert jnp.array_equal(embed_ind, ind_from_dist)

    # quantize rows are exactly the (bf16-rounded) codebook rows at embed_ind.
    embed_bf16 = embed.astype(jnp.bfloat16).astype(jnp.float32)
    quant_ref = jnp.take(embed_bf16[0], embed_ind.reshape(-1), axis=0)
    quant_ref = quant_ref.reshape(batch, seq, dim)
    assert jnp.allclose(quantize, quant_ref, atol=1e-6)

    print("KERNEL_OK")
</pallas_src>

<mosaic_0001>
module attributes {stable_mosaic.version = 11 : i64} {
  func.func @_vq_kernel(%arg0: i32, %arg1: i32, %arg2: memref<1x16x32xbf16, #tpu.memory_space<vmem>>, %arg3: memref<1x64x32xbf16, #tpu.memory_space<vmem>>, %arg4: memref<1x16x64xf32, #tpu.memory_space<vmem>>, %arg5: memref<1x16x1xi32, #tpu.memory_space<vmem>>, %arg6: memref<1x16x32xf32, #tpu.memory_space<vmem>>) attributes {dimension_semantics = [#tpu.dimension_semantics<parallel>, #tpu.dimension_semantics<parallel>], iteration_bounds = array<i64: 1, 1>, scalar_prefetch = 0 : i64, scratch_operands = 0 : i64, tpu.core_type = #tpu.core_type<tc>, window_params = [{transform_indices = @transform_0, window_bounds = array<i64: 1, 16, 32>}, {transform_indices = @transform_1, window_bounds = array<i64: 1, 64, 32>}, {transform_indices = @transform_2, window_bounds = array<i64: 1, 16, 64>}, {transform_indices = @transform_3, window_bounds = array<i64: 1, 16, 1>}, {transform_indices = @transform_4, window_bounds = array<i64: 1, 16, 32>}]} {
    %c0 = arith.constant 0 : index
    %c0_0 = arith.constant 0 : index
    %c0_1 = arith.constant 0 : index
    %0 = vector.load %arg2[%c0, %c0_0, %c0_1] : memref<1x16x32xbf16, #tpu.memory_space<vmem>>, vector<1x16x32xbf16>
    %1 = vector.shape_cast %0 : vector<1x16x32xbf16> to vector<16x32xbf16>
    %c0_2 = arith.constant 0 : index
    %c0_3 = arith.constant 0 : index
    %c0_4 = arith.constant 0 : index
    %2 = vector.load %arg3[%c0_2, %c0_3, %c0_4] : memref<1x64x32xbf16, #tpu.memory_space<vmem>>, vector<1x64x32xbf16>
    %3 = vector.shape_cast %2 : vector<1x64x32xbf16> to vector<64x32xbf16>
    %cst = arith.constant dense<0.000000e+00> : vector<16x64xf32>
    %4 = tpu.matmul %1, %3, %cst {dimension_numbers = #tpu.dot_dimension_numbers<[1], [1], [0], [0], [0, 0, 1, 0], [], []>} : vector<16x32xbf16>, vector<64x32xbf16>, vector<16x64xf32> -> vector<16x64xf32>
    %cst_5 = arith.constant dense<0xFF800000> : vector<16xf32>
    %5 = vector.multi_reduction <maximumf>, %4, %cst_5 [1] : vector<16x64xf32> to vector<16xf32>
    %6 = vector.shape_cast %5 : vector<16xf32> to vector<16x1xf32>
    %7 = tpu.iota {dimensions = array<i32: 1>} : vector<16x64xi32>
    %8 = vector.broadcast %6 : vector<16x1xf32> to vector<16x64xf32>
    %9 = arith.cmpf oeq, %4, %8 : vector<16x64xf32>
    %c64_i32 = arith.constant 64 : i32
    %10 = vector.broadcast %c64_i32 : i32 to vector<16x64xi32>
    %11 = arith.select %9, %7, %10 : vector<16x64xi1>, vector<16x64xi32>
    %cst_6 = arith.constant dense<2147483647> : vector<16xi32>
    %12 = vector.multi_reduction <minsi>, %11, %cst_6 [1] : vector<16x64xi32> to vector<16xi32>
    %13 = vector.shape_cast %12 : vector<16xi32> to vector<16x1xi32>
    %14 = vector.broadcast %13 : vector<16x1xi32> to vector<16x64xi32>
    %15 = arith.cmpi eq, %7, %14 : vector<16x64xi32>
    %16 = arith.extui %15 : vector<16x64xi1> to vector<16x64xi32>
    %17 = arith.sitofp %16 : vector<16x64xi32> to vector<16x64xf32>
    %18 = arith.truncf %17 : vector<16x64xf32> to vector<16x64xbf16>
    %cst_7 = arith.constant dense<0.000000e+00> : vector<16x32xf32>
    %19 = tpu.matmul %18, %3, %cst_7 {dimension_numbers = #tpu.dot_dimension_numbers<[1], [0], [0], [1], [0, 0, 1, 1], [], []>} : vector<16x64xbf16>, vector<64x32xbf16>, vector<16x32xf32> -> vector<16x32xf32>
    %c0_8 = arith.constant 0 : index
    %c0_9 = arith.constant 0 : index
    %c0_10 = arith.constant 0 : index
    %20 = vector.load %arg4[%c0_8, %c0_9, %c0_10] : memref<1x16x64xf32, #tpu.memory_space<vmem>>, vector<1x16x64xf32>
    %21 = vector.shape_cast %20 : vector<1x16x64xf32> to vector<16x64xf32>
    %22 = vector.shape_cast %4 : vector<16x64xf32> to vector<1x16x64xf32>
    tpu.vector_store %arg4[%c0_8, %c0_9, %c0_10], %22 {strides = array<i32>} : memref<1x16x64xf32, #tpu.memory_space<vmem>>, vector<1x16x64xf32>,
    %c0_11 = arith.constant 0 : index
    %c0_12 = arith.constant 0 : index
    %c0_13 = arith.constant 0 : index
    %23 = vector.load %arg5[%c0_11, %c0_12, %c0_13] : memref<1x16x1xi32, #tpu.memory_space<vmem>>, vector<1x16x1xi32>
    %24 = vector.shape_cast %23 : vector<1x16x1xi32> to vector<16x1xi32>
    %25 = vector.shape_cast %13 : vector<16x1xi32> to vector<1x16x1xi32>
    tpu.vector_store %arg5[%c0_11, %c0_12, %c0_13], %25 {strides = array<i32>} : memref<1x16x1xi32, #tpu.memory_space<vmem>>, vector<1x16x1xi32>,
    %c0_14 = arith.constant 0 : index
    %c0_15 = arith.constant 0 : index
    %c0_16 = arith.constant 0 : index
    %26 = vector.load %arg6[%c0_14, %c0_15, %c0_16] : memref<1x16x32xf32, #tpu.memory_space<vmem>>, vector<1x16x32xf32>
    %27 = vector.shape_cast %26 : vector<1x16x32xf32> to vector<16x32xf32>
    %28 = vector.shape_cast %19 : vector<16x32xf32> to vector<1x16x32xf32>
    tpu.vector_store %arg6[%c0_14, %c0_15, %c0_16], %28 {strides = array<i32>} : memref<1x16x32xf32, #tpu.memory_space<vmem>>, vector<1x16x32xf32>,
    return
  }
  func.func @transform_0(%arg0: i32, %arg1: i32) -> (i32, i32, i32) {
    %c0_i32 = arith.constant 0 : i32
    %c0_i32_0 = arith.constant 0 : i32
    return %arg0, %arg1, %c0_i32 : i32, i32, i32
  }
  func.func @transform_1(%arg0: i32, %arg1: i32) -> (i32, i32, i32) {
    %c0_i32 = arith.constant 0 : i32
    %c0_i32_0 = arith.constant 0 : i32
    %c0_i32_1 = arith.constant 0 : i32
    return %arg0, %c0_i32, %c0_i32_0 : i32, i32, i32
  }
  func.func @transform_2(%arg0: i32, %arg1: i32) -> (i32, i32, i32) {
    %c0_i32 = arith.constant 0 : i32
    %c0_i32_0 = arith.constant 0 : i32
    return %arg0, %arg1, %c0_i32 : i32, i32, i32
  }
  func.func @transform_3(%arg0: i32, %arg1: i32) -> (i32, i32, i32) {
    %c0_i32 = arith.constant 0 : i32
    %c0_i32_0 = arith.constant 0 : i32
    return %arg0, %arg1, %c0_i32 : i32, i32, i32
  }
  func.func @transform_4(%arg0: i32, %arg1: i32) -> (i32, i32, i32) {
    %c0_i32 = arith.constant 0 : i32
    %c0_i32_0 = arith.constant 0 : i32
    return %arg0, %arg1, %c0_i32 : i32, i32, i32
  }
}

</mosaic_0001>

<llo_original>
// kernel: cosine_sim_codebook_forward.1
$region0: #{cosine_sim_codebook_forward.1}
  #allocation0 [shape = 'u32[]', space=smem, size = 0x4, offset = 0x4, fixed_abs, tag = 'smem constant byte address 0x4 - core index']
  #allocation1 [shape = 'u32[144,128]{1,0:T(1,128)}', space=vmem, size = 0x12000, scoped, tag = 'internal scratch']
  %s0 = inlined_call_operand.vmem [shape: bf16[1,16,32], index: 0, kind: input, shape index: {}]
  %s1 = inlined_call_operand.vmem [shape: bf16[1,64,32], index: 1, kind: input, shape index: {}]
  %s2 = inlined_call_operand.hbm [shape: f32[1,16,64], index: 2, kind: output, shape index: {0}]
  %s3 = inlined_call_operand.vmem [shape: s32[1,16,1], index: 3, kind: output, shape index: {1}]
  %s4 = inlined_call_operand.hbm [shape: f32[1,16,32], index: 4, kind: output, shape index: {2}]
  %5 = xla_tuple %s2, %s3, %s4
  %s6 = sld [smem:[#allocation0]]
  $region34: #{cosine_sim_codebook_forward.1} parent=0
    _
  %s8 = ssub.s32 1, %s6
  %s9 = scalar_select 0, %s8, %s6
  $region1: #{cosine_sim_codebook_forward.1} parent=0
    #allocation2 [shape = 'u8[8192]{0}', space=vmem, size = 0x2000, scoped, tag = 'output window, operand 0, single buffered']
    #allocation3 [shape = 's32[1]{0}', space=sflag, size = 0x4, scoped, tag = 'scoped memory for cosine_sim_codebook_forward.1']
    #allocation4 [shape = 'u8[8192]{0}', space=vmem, size = 0x2000, scoped, tag = 'output window, operand 2, single buffered']
    #allocation5 [shape = 's32[1]{0}', space=sflag, size = 0x4, scoped, tag = 'scoped memory for cosine_sim_codebook_forward.1']
    %10 = vsyncpa [#allocation3], 0
    %11 = vsyncpa [#allocation5], 0
    // Predicated region
    $region2: #{cosine_sim_codebook_forward.1} parent=1 // pred_check
      _
    $region3: #{cosine_sim_codebook_forward.1} parent=1 // pred_check_branch
      %13 = sbr.rel (0) target = $region5
    $region4: #{cosine_sim_codebook_forward.1} parent=1 // pred_region
      _
    $region5: #{cosine_sim_codebook_forward.1} parent=1 // pred_fallthru
      _
    // Predicated region
    $region6: #{cosine_sim_codebook_forward.1} parent=1 // pred_check
      _
    $region7: #{cosine_sim_codebook_forward.1} parent=1 // pred_check_branch
      %15 = sbr.rel (0) target = $region9
    $region8: #{cosine_sim_codebook_forward.1} parent=1 // pred_region
      _
    $region9: #{cosine_sim_codebook_forward.1} parent=1 // pred_fallthru
      _
    %v17 = vld [vmem:[%s0] sm:$0xf]
    %v18 = vld [vmem:[%s0 + $0x4] sm:$0xf]
    %v19 = vld [vmem:[%s1] sm:$0xf]
    %v20 = vld [vmem:[%s1 + $0x4] sm:$0xf]
    %v21 = vld [vmem:[%s1 + $0x8] sm:$0xf]
    %v22 = vld [vmem:[%s1 + $0xc] sm:$0xf]
    %v23 = vld [vmem:[%s1 + $0x10] sm:$0xf]
    %v24 = vld [vmem:[%s1 + $0x14] sm:$0xf]
    %v25 = vld [vmem:[%s1 + $0x18] sm:$0xf]
    %v26 = vld [vmem:[%s1 + $0x1c] sm:$0xf]
    %v29 = vunpack.c.l.b16 %v17
    %v30 = vunpack.c.l.b16 %v18
    %v31 = vpack.c.b16 %v30, %v29
    %v40 = vunpack.c.l.b16 %v19
    %v41 = vunpack.c.l.b16 %v20
    %v42 = vunpack.c.l.b16 %v21
    %v43 = vunpack.c.l.b16 %v22
    %v44 = vunpack.c.l.b16 %v23
    %v45 = vunpack.c.l.b16 %v24
    %v46 = vunpack.c.l.b16 %v25
    %v47 = vunpack.c.l.b16 %v26
    %v48 = vpack.c.b16 %v41, %v40
    %v49 = vpack.c.b16 %v43, %v42
    %v50 = vpack.c.b16 %v45, %v44
    %v51 = vpack.c.b16 %v47, %v46
    %vm52 = vcmask 261120
    %v54 = vsel %vm52, %v31, 0
    %v57 = vsel %vm52, %v48, 0
    %v60 = vsel %vm52, %v49, 0
    %v63 = vsel %vm52, %v50, 0
    %v66 = vsel %vm52, %v51, 0
    %68 = vmatprep.subr.bf16.mxu0 0
    %69 = vmatpush1.bf16.xpose.msra.mxu0 0
    %70 = vmatprep.subr.bf16.mxu0 0
    %71 = vmatpush1.bf16.xpose.msra.mxu0 0
    %72 = vmatprep.subr.bf16.mxu0 0
    %73 = vmatpush1.bf16.xpose.msra.mxu0 0
    %74 = vmatprep.subr.bf16.mxu0 0
    %75 = vmatpush1.bf16.xpose.msra.mxu0 0
    %76 = vmatprep.subr.bf16.mxu0 0
    %77 = vmatpush1.bf16.xpose.msra.mxu0 %v66
    %78 = vmatprep.subr.bf16.mxu0 0
    %79 = vmatpush1.bf16.xpose.msra.mxu0 %v63
    %80 = vmatprep.subr.bf16.mxu0 0
    %81 = vmatpush1.bf16.xpose.msra.mxu0 %v60
    %82 = vmatprep.subr.bf16.mxu0 0
    %83 = vmatpush1.bf16.xpose.msra.mxu0 %v57
    %84 = vmatprep.subr.bf16.mxu0 0
    %85 = vmatpush2.bf16.xpose.msra.mxu0 0
    %86 = vmatprep.subr.bf16.mxu0 0
    %87 = vmatpush2.bf16.xpose.msra.mxu0 0
    %88 = vmatprep.subr.bf16.mxu0 0
    %89 = vmatpush2.bf16.xpose.msra.mxu0 0
    %90 = vmatprep.subr.bf16.mxu0 0
    %91 = vmatpush2.bf16.xpose.msra.mxu0 0
    %92 = vmatprep.subr.bf16.mxu0 0
    %93 = vmatpush2.bf16.xpose.msra.mxu0 0
    %94 = vmatprep.subr.bf16.mxu0 0
    %95 = vmatpush2.bf16.xpose.msra.mxu0 0
    %96 = vmatprep.subr.bf16.mxu0 0
    %97 = vmatpush2.bf16.xpose.msra.mxu0 0
    %98 = vmatprep.subr.bf16.mxu0 0
    %99 = vmatpush2.bf16.xpose.msra.mxu0 0
    %100 = vmatprep.mubr.bf16.mxu0 0
    %101 = vmatmul.mubr.bf16.gmra.mxu0 %v54
    %v102 = vpop.f32.mrf.mxu0
    %v103 = vadd.f32 0.0, %v102
    %v104 = vpop.f32.mrf.mxu0
    %v105 = vpop.f32.mrf.mxu0
    %v106 = vadd.f32 0.0, %v105
    %v107 = vpop.f32.mrf.mxu0
    %108 = vdwg.mxu0
    %vm109 = vcmask 523264
    %v110 = vsel %vm109, %v103, -inf
    %111 = vmax.xlane.f32.xlu0 %v110
    %v112 = vpop.xlane.xlu0 %111
    %v113 = vsel %vm109, %v106, -inf
    %114 = vmax.xlane.f32.xlu0 %v113
    %v115 = vpop.xlane.xlu0 %114
    %v116 = vlaneseq
    %v117 = vand.u32 %v116, 127
    %vm118 = vcmp.eq.f32.partialorder %v103, %v112
    %vm119 = vcmp.eq.f32.partialorder %v106, %v115
    %v120 = vsel %vm118, %v117, 64
    %v121 = vsel %vm119, %v117, 64
    %v122 = vsel %vm109, %v120, 2147483647
    %v123 = vand.u32 %v122, 65535
    %v124 = vshra.s32 %v122, 16
    %v125 = vcvt.s32.f32 %v123
    %v126 = vcvt.s32.f32 %v124
    %127 = vmin.xlane.f32.xlu0 %v126
    %v128 = vpop.xlane.xlu0 %127
    %vm129 = vcmp.eq.f32.partialorder %v126, %v128
    %v130 = vsel %vm129, %v125, inf
    %131 = vmin.xlane.f32.xlu0 %v130
    %v132 = vpop.xlane.xlu0 %131
    %v133 = vcvt.f32.s32 %v132
    %v134 = vcvt.f32.s32 %v128
    %v135 = vshll.u32 %v134, 16
    %v136 = vadd.s32 %v135, %v133
    %v137 = vsel %vm109, %v121, 2147483647
    %v138 = vand.u32 %v137, 65535
    %v139 = vshra.s32 %v137, 16
    %v140 = vcvt.s32.f32 %v138
    %v141 = vcvt.s32.f32 %v139
    %142 = vmin.xlane.f32.xlu0 %v141
    %v143 = vpop.xlane.xlu0 %142
    %vm144 = vcmp.eq.f32.partialorder %v141, %v143
    %v145 = vsel %vm144, %v140, inf
    %146 = vmin.xlane.f32.xlu0 %v145
    %v147 = vpop.xlane.xlu0 %146
    %v148 = vcvt.f32.s32 %v147
    %v149 = vcvt.f32.s32 %v143
    %v150 = vshll.u32 %v149, 16
    %v151 = vadd.s32 %v150, %v148
    %vm152 = vcmp.eq.s32.totalorder %v117, %v136
    %vm153 = vcmp.eq.s32.totalorder %v117, %v151
    %v154 = vsel %vm152, 1, 0
    %v155 = vsel %vm153, 1, 0
    %v156 = vcvt.s32.f32 %v154
    %v157 = vcvt.s32.f32 %v155
    %v158 = vpack.c.bf16 %v157, %v156
    %v164 = vsel %vm109, %v158, 0
    %166 = vmatprep.subr.bf16.mxu0 0
    %167 = vmatpush1.bf16.msra.mxu0 0
    %168 = vmatprep.subr.bf16.mxu0 0
    %169 = vmatpush1.bf16.msra.mxu0 0
    %170 = vmatprep.subr.bf16.mxu0 0
    %171 = vmatpush1.bf16.msra.mxu0 0
    %172 = vmatprep.subr.bf16.mxu0 0
    %173 = vmatpush1.bf16.msra.mxu0 0
    %174 = vmatprep.subr.bf16.mxu0 0
    %175 = vmatpush1.bf16.msra.mxu0 %v51
    %176 = vmatprep.subr.bf16.mxu0 0
    %177 = vmatpush1.bf16.msra.mxu0 %v50
    %178 = vmatprep.subr.bf16.mxu0 0
    %179 = vmatpush1.bf16.msra.mxu0 %v49
    %180 = vmatprep.subr.bf16.mxu0 0
    %181 = vmatpush1.bf16.msra.mxu0 %v48
    %182 = vmatprep.subr.bf16.mxu0 0
    %183 = vmatpush2.bf16.msra.mxu0 0
    %184 = vmatprep.subr.bf16.mxu0 0
    %185 = vmatpush2.bf16.msra.mxu0 0
    %186 = vmatprep.subr.bf16.mxu0 0
    %187 = vmatpush2.bf16.msra.mxu0 0
    %188 = vmatprep.subr.bf16.mxu0 0
    %189 = vmatpush2.bf16.msra.mxu0 0
    %190 = vmatprep.subr.bf16.mxu0 0
    %191 = vmatpush2.bf16.msra.mxu0 0
    %192 = vmatprep.subr.bf16.mxu0 0
    %193 = vmatpush2.bf16.msra.mxu0 0
    %194 = vmatprep.subr.bf16.mxu0 0
    %195 = vmatpush2.bf16.msra.mxu0 0
    %196 = vmatprep.subr.bf16.mxu0 0
    %197 = vmatpush2.bf16.msra.mxu0 0
    %198 = vmatprep.mubr.bf16.mxu0 0
    %199 = vmatmul.mubr.bf16.gmra.mxu0 %v164
    %v200 = vpop.f32.mrf.mxu0
    %v201 = vadd.f32 0.0, %v200
    %v202 = vpop.f32.mrf.mxu0
    %v203 = vpop.f32.mrf.mxu0
    %v204 = vadd.f32 0.0, %v203
    %v205 = vpop.f32.mrf.mxu0
    %206 = vdwg.mxu0
    %207 = vst.msk [vmem:[#allocation2] sm:$0xff] %vm109, %v103
    %208 = vst.msk [vmem:[#allocation2 + $0x8] sm:$0xff] %vm109, %v106
    %vm209 = vcmask 7168
    %210 = vst.msk [vmem:[%s3] sm:$0xff] %vm209, %v136
    %211 = vst.msk [vmem:[%s3 + $0x8] sm:$0xff] %vm209, %v151
    %212 = vst.msk [vmem:[#allocation4] sm:$0xff] %vm52, %v201
    %213 = vst.msk [vmem:[#allocation4 + $0x8] sm:$0xff] %vm52, %v204
    // Predicated region
    $region10: #{cosine_sim_codebook_forward.1} parent=1 // pred_check
      _
    $region11: #{cosine_sim_codebook_forward.1} parent=1 // pred_check_branch
      %215 = sbr.rel (0) target = $region13
    $region12: #{cosine_sim_codebook_forward.1} parent=1 // pred_region
      %s217 = ssub.s32 256, 256
      %218 = vsyncadd [#allocation3], %s217
      %s219 = sshll.u32 [#allocation2], 4
      %s220 = int_to_ptr.vmem [resolvable:$true] %s219
      %225 = dma.vmem_to_hbm [thread:$0]  %s220, 256, %s2, [#allocation3], 128, 128, 8
    $region13: #{cosine_sim_codebook_forward.1} parent=1 // pred_fallthru
      _
    // Predicated region
    $region14: #{cosine_sim_codebook_forward.1} parent=1 // pred_check
      _
    $region15: #{cosine_sim_codebook_forward.1} parent=1 // pred_check_branch
      %227 = sbr.rel (0) target = $region17
    $region16: #{cosine_sim_codebook_forward.1} parent=1 // pred_region
      _
    $region17: #{cosine_sim_codebook_forward.1} parent=1 // pred_fallthru
      _
    // Predicated region
    $region18: #{cosine_sim_codebook_forward.1} parent=1 // pred_check
      _
    $region19: #{cosine_sim_codebook_forward.1} parent=1 // pred_check_branch
      %229 = sbr.rel (0) target = $region21
    $region20: #{cosine_sim_codebook_forward.1} parent=1 // pred_region
      %s231 = ssub.s32 256, 256
      %232 = vsyncadd [#allocation5], %s231
      %s233 = sshll.u32 [#allocation4], 4
      %s234 = int_to_ptr.vmem [resolvable:$true] %s233
      %239 = dma.vmem_to_hbm [thread:$0]  %s234, 256, %s4, [#allocation5], 128, 128, 8
    $region21: #{cosine_sim_codebook_forward.1} parent=1 // pred_fallthru
      _
    // Predicated region
    $region22: #{cosine_sim_codebook_forward.1} parent=1 // pred_check
      _
    $region23: #{cosine_sim_codebook_forward.1} parent=1 // pred_check_branch
      %241 = sbr.rel (0) target = $region25
    $region24: #{cosine_sim_codebook_forward.1} parent=1 // pred_region
      %242 = dma.done [#allocation3], 256
    $region25: #{cosine_sim_codebook_forward.1} parent=1 // pred_fallthru
      _
    // Predicated region
    $region26: #{cosine_sim_codebook_forward.1} parent=1 // pred_check
      _
    $region27: #{cosine_sim_codebook_forward.1} parent=1 // pred_check_branch
      %244 = sbr.rel (0) target = $region29
    $region28: #{cosine_sim_codebook_forward.1} parent=1 // pred_region
      _
    $region29: #{cosine_sim_codebook_forward.1} parent=1 // pred_fallthru
      _
    // Predicated region
    $region30: #{cosine_sim_codebook_forward.1} parent=1 // pred_check
      _
    $region31: #{cosine_sim_codebook_forward.1} parent=1 // pred_check_branch
      %246 = sbr.rel (0) target = $region33
    $region32: #{cosine_sim_codebook_forward.1} parent=1 // pred_region
      %247 = dma.done [#allocation5], 256
    $region33: #{cosine_sim_codebook_forward.1} parent=1 // pred_fallthru
      _
    %248 = vsyncpa [#allocation3], 1
    %249 = vsyncpa [#allocation5], 1

</llo_original>
